<compile_context>
chip_gen: v5e
topology: v5e:2x2
jax: 0.10.0
libtpu: 0.0.40
codegen_flags: <defaults>
</compile_context>

<pallas_src>
import jax
import jax.numpy as jnp
from jax.experimental import pallas as pl
from jax.experimental.pallas import tpu as pltpu


def _round_up(v, m):
    return ((v + m - 1) // m) * m


def _tensorcore_count():
    """Best-effort TensorCores per device (2 on v7x, else 1). Safe fallback = 1."""
    try:
        dev = jax.devices()[0]
        for attr in ("num_cores", "core_count"):
            val = getattr(dev, attr, None)
            if val:
                return max(1, int(val))
    except Exception:
        pass
    return 1


def make_mlp_kernel(in_features, hidden, out_features, group):
    IN, H, OUT, G = in_features, hidden, out_features, group
    GH, GO = G * H, G * OUT

    def mlp_kernel(x_ref, m1_ref, m2_ref, m3_ref, m4_ref, b_ref, o_ref):
        x = x_ref[...]                       # (Rt, G*IN) dense, G samples per row
        b1 = b_ref[0:1, :]                   # (1, GH)  interleaved biases
        b2 = b_ref[1:2, :]
        b3 = b_ref[2:3, :]
        b4 = b_ref[3:4, 0:GO]                # (1, GO)

        # Each matmul applies one Linear layer to the G interleaved samples in
        # every row (block-diagonal weights) -> K = 128/256 MXU contractions.
        h = jnp.dot(x, m1_ref[...], preferred_element_type=jnp.float32) + b1
        h = jnp.maximum(h, 0.0)
        h = jnp.dot(h, m2_ref[...], preferred_element_type=jnp.float32) + b2
        h = jnp.maximum(h, 0.0)
        h = jnp.dot(h, m3_ref[...], preferred_element_type=jnp.float32) + b3
        h = jnp.maximum(h, 0.0)
        out = jnp.dot(h, m4_ref[...], preferred_element_type=jnp.float32) + b4
        o_ref[...] = out.astype(o_ref.dtype)  # (Rt, G*OUT) -> reshapes to (B, OUT)

    return mlp_kernel


def pack_params(params, input_features, hidden_units, output_features):
    """Expand PyTorch-style (out,in) weights into interleaved block-diagonal
    operands M_l = kron(I_G, W_l^T) and tiled bias rows (done once)."""
    IN, H, OUT = input_features, hidden_units, output_features
    # Fail loudly if dims break the interleaving assumptions (review request).
    assert 128 % IN == 0, (
        "interleaved layout needs input_features to divide 128")
    # TODO(synk): support IN not dividing 128 by padding the feature dim.
    G = 128 // IN
    GH, GO = G * H, G * OUT
    eye = jnp.eye(G, dtype=jnp.float32)
    f32 = lambda a: jnp.asarray(a, jnp.float32)

    packed = {
        "m1": jnp.kron(eye, f32(params["w1"]).T),   # (G*IN, GH) = (128, GH)
        "m2": jnp.kron(eye, f32(params["w2"]).T),   # (GH, GH)
        "m3": jnp.kron(eye, f32(params["w3"]).T),   # (GH, GH)
        "m4": jnp.kron(eye, f32(params["w4"]).T),   # (GH, GO)
    }
    biases = jnp.zeros((4, GH), jnp.float32)
    biases = biases.at[0, :].set(jnp.tile(f32(params["b1"]), G))
    biases = biases.at[1, :].set(jnp.tile(f32(params["b2"]), G))
    biases = biases.at[2, :].set(jnp.tile(f32(params["b3"]), G))
    biases = biases.at[3, :GO].set(jnp.tile(f32(params["b4"]), G))
    packed["biases"] = biases
    packed["raw"] = params
    packed["dims"] = (IN, H, OUT)
    packed["group"] = G
    return packed


def naca_mlp_forward(x, packed, *, max_batch_tile=32768, force_pallas=False,
                     small_batch_threshold=512):
    """x: (B, IN) float. Returns (B, OUT) float32 matching the PyTorch module."""
    IN, H, OUT = packed["dims"]
    G = packed["group"]
    GH, GO = G * H, G * OUT
    B = x.shape[0]
    assert x.shape[1] == IN

    if not force_pallas and B < small_batch_threshold:
        # Tiny batches: launch overhead dominates; plain fused XLA is optimal.
        return reference_forward(x, packed["raw"])

    x = jnp.asarray(x, jnp.float32)

    # ---- batch tiling in rows of G samples --------------------------------
    r_total = pl.cdiv(B, G)                               # 128-lane rows needed
    rt_max = max(8, (max_batch_tile // G) // 8 * 8)       # rows per grid step
    n_cores = _tensorcore_count()
    want_core_split = n_cores > 1 and r_total >= 16       # keep both v7x TCs busy
    if r_total <= rt_max and not want_core_split:
        rt, n_blocks = r_total, 1                         # single step (v5e/v6e)
    else:
        n_blocks = max(n_cores if want_core_split else 1, pl.cdiv(r_total, rt_max))
        rt = min(rt_max, _round_up(pl.cdiv(r_total, n_blocks), 8))
        n_blocks = pl.cdiv(r_total, rt)

    r_pad = rt * n_blocks
    b_pad = r_pad * G
    if b_pad != B:                                        # only for ragged batches
        x = jnp.pad(x, ((0, b_pad - B), (0, 0)))
    x_rows = x.reshape(r_pad, G * IN)                     # free row-major reshape

    kernel = make_mlp_kernel(IN, H, OUT, G)
    out_rows = pl.pallas_call(
        kernel,
        out_shape=jax.ShapeDtypeStruct((r_pad, GO), jnp.float32),
        grid_spec=pl.GridSpec(
            grid=(n_blocks,),
            in_specs=[
                pl.BlockSpec((rt, G * IN), lambda i: (i, 0)),
                pl.BlockSpec((G * IN, GH), lambda i: (0, 0)),
                pl.BlockSpec((GH, GH), lambda i: (0, 0)),
                pl.BlockSpec((GH, GH), lambda i: (0, 0)),
                pl.BlockSpec((GH, GO), lambda i: (0, 0)),
                pl.BlockSpec((4, GH), lambda i: (0, 0)),
            ],
            out_specs=pl.BlockSpec((rt, GO), lambda i: (i, 0)),
        ),
        compiler_params=pltpu.CompilerParams(
            dimension_semantics=("parallel",),
            vmem_limit_bytes=32 * 1024 * 1024,   # explicit: v5e default is 16 MiB
        ),
    )(x_rows, packed["m1"], packed["m2"], packed["m3"], packed["m4"],
      packed["biases"])

    out = out_rows.reshape(b_pad, OUT)                    # free reshape to samples
    return out[:B] if b_pad != B else out


def init_params(key, input_features, output_features, hidden_units=8):
    """PyTorch nn.Linear-style init: weights (out,in), biases (out,)."""
    shapes = [(hidden_units, input_features),
              (hidden_units, hidden_units),
              (hidden_units, hidden_units),
              (output_features, hidden_units)]
    params = {}
    for idx, (fan_out, fan_in) in enumerate(shapes, start=1):
        key, kw, kb = jax.random.split(key, 3)
        bound = 1.0 / (float(fan_in) ** 0.5)
        params[f"w{idx}"] = jax.random.uniform(
            kw, (fan_out, fan_in), jnp.float32, -bound, bound)
        params[f"b{idx}"] = jax.random.uniform(
            kb, (fan_out,), jnp.float32, -bound, bound)
    return params


def reference_forward(x, params):
    h = jnp.asarray(x, jnp.float32)
    for idx in range(1, 4):
        h = jnp.maximum(h @ params[f"w{idx}"].T + params[f"b{idx}"], 0.0)
    return h @ params["w4"].T + params["b4"]


if __name__ == "__main__":
    key = jax.random.PRNGKey(0)
    input_features, output_features, hidden_units = 4, 3, 8

    params = init_params(key, input_features, output_features, hidden_units)
    packed = pack_params(params, input_features, hidden_units, output_features)

    # Test 1: small batch (single grid step), forced through the Pallas kernel.
    key, kx = jax.random.split(key)
    x_small = jax.random.normal(kx, (32, input_features), jnp.float32)
    out_small = jax.block_until_ready(
        naca_mlp_forward(x_small, packed, force_pallas=True))
    ref_small = reference_forward(x_small, params)
    assert out_small.shape == (32, output_features)
    assert jnp.allclose(out_small, ref_small, atol=1e-5, rtol=1e-5), \
        "small-batch mismatch vs reference"

    # Test 2: ragged batch + multi-block grid (exercises padding + tiled path).
    key, kx = jax.random.split(key)
    x_big = jax.random.normal(kx, (1000, input_features), jnp.float32)
    out_big = jax.block_until_ready(
        naca_mlp_forward(x_big, packed, max_batch_tile=256, force_pallas=True))
    ref_big = reference_forward(x_big, params)
    assert out_big.shape == (1000, output_features)
    assert jnp.allclose(out_big, ref_big, atol=1e-5, rtol=1e-5), \
        "multi-block mismatch vs reference"

    print("KERNEL_OK")
</pallas_src>

<mosaic_0001>
module attributes {stable_mosaic.version = 11 : i64} {
  func.func @mlp_kernel(%arg0: i32, %arg1: memref<1x128xf32, #tpu.memory_space<vmem>>, %arg2: memref<128x256xf32, #tpu.memory_space<vmem>>, %arg3: memref<256x256xf32, #tpu.memory_space<vmem>>, %arg4: memref<256x256xf32, #tpu.memory_space<vmem>>, %arg5: memref<256x96xf32, #tpu.memory_space<vmem>>, %arg6: memref<4x256xf32, #tpu.memory_space<vmem>>, %arg7: memref<1x96xf32, #tpu.memory_space<vmem>>) attributes {dimension_semantics = [#tpu.dimension_semantics<parallel>], iteration_bounds = array<i64: 1>, scalar_prefetch = 0 : i64, scratch_operands = 0 : i64, tpu.core_type = #tpu.core_type<tc>, window_params = [{transform_indices = @transform_0, window_bounds = array<i64: 1, 128>}, {pipeline_mode = #tpu.pipeline_mode<synchronous>, transform_indices = @transform_1, window_bounds = array<i64: 128, 256>}, {pipeline_mode = #tpu.pipeline_mode<synchronous>, transform_indices = @transform_2, window_bounds = array<i64: 256, 256>}, {pipeline_mode = #tpu.pipeline_mode<synchronous>, transform_indices = @transform_3, window_bounds = array<i64: 256, 256>}, {pipeline_mode = #tpu.pipeline_mode<synchronous>, transform_indices = @transform_4, window_bounds = array<i64: 256, 96>}, {pipeline_mode = #tpu.pipeline_mode<synchronous>, transform_indices = @transform_5, window_bounds = array<i64: 4, 256>}, {transform_indices = @transform_6, window_bounds = array<i64: 1, 96>}]} {
    %c0 = arith.constant 0 : index
    %c0_0 = arith.constant 0 : index
    %0 = vector.load %arg1[%c0, %c0_0] : memref<1x128xf32, #tpu.memory_space<vmem>>, vector<1x128xf32>
    %c0_1 = arith.constant 0 : index
    %c0_2 = arith.constant 0 : index
    %1 = vector.load %arg6[%c0_1, %c0_2] : memref<4x256xf32, #tpu.memory_space<vmem>>, vector<1x256xf32>
    %c1 = arith.constant 1 : index
    %c0_3 = arith.constant 0 : index
    %2 = vector.load %arg6[%c1, %c0_3] : memref<4x256xf32, #tpu.memory_space<vmem>>, vector<1x256xf32>
    %c2 = arith.constant 2 : index
    %c0_4 = arith.constant 0 : index
    %3 = vector.load %arg6[%c2, %c0_4] : memref<4x256xf32, #tpu.memory_space<vmem>>, vector<1x256xf32>
    %c3 = arith.constant 3 : index
    %c0_5 = arith.constant 0 : index
    %4 = vector.load %arg6[%c3, %c0_5] : memref<4x256xf32, #tpu.memory_space<vmem>>, vector<1x96xf32>
    %c0_6 = arith.constant 0 : index
    %c0_7 = arith.constant 0 : index
    %5 = vector.load %arg2[%c0_6, %c0_7] : memref<128x256xf32, #tpu.memory_space<vmem>>, vector<128x256xf32>
    %cst = arith.constant dense<0.000000e+00> : vector<1x256xf32>
    %6 = tpu.matmul %0, %5, %cst {dimension_numbers = #tpu.dot_dimension_numbers<[1], [0], [0], [1], [0, 0, 1, 1], [], []>} : vector<1x128xf32>, vector<128x256xf32>, vector<1x256xf32> -> vector<1x256xf32>
    %7 = arith.addf %6, %1 : vector<1x256xf32>
    %cst_8 = arith.constant 0.000000e+00 : f32
    %8 = vector.broadcast %cst_8 : f32 to vector<1x256xf32>
    %9 = arith.maximumf %7, %8 : vector<1x256xf32>
    %c0_9 = arith.constant 0 : index
    %c0_10 = arith.constant 0 : index
    %10 = vector.load %arg3[%c0_9, %c0_10] : memref<256x256xf32, #tpu.memory_space<vmem>>, vector<256x256xf32>
    %cst_11 = arith.constant dense<0.000000e+00> : vector<1x256xf32>
    %11 = tpu.matmul %9, %10, %cst_11 {dimension_numbers = #tpu.dot_dimension_numbers<[1], [0], [0], [1], [0, 0, 1, 1], [], []>} : vector<1x256xf32>, vector<256x256xf32>, vector<1x256xf32> -> vector<1x256xf32>
    %12 = arith.addf %11, %2 : vector<1x256xf32>
    %cst_12 = arith.constant 0.000000e+00 : f32
    %13 = vector.broadcast %cst_12 : f32 to vector<1x256xf32>
    %14 = arith.maximumf %12, %13 : vector<1x256xf32>
    %c0_13 = arith.constant 0 : index
    %c0_14 = arith.constant 0 : index
    %15 = vector.load %arg4[%c0_13, %c0_14] : memref<256x256xf32, #tpu.memory_space<vmem>>, vector<256x256xf32>
    %cst_15 = arith.constant dense<0.000000e+00> : vector<1x256xf32>
    %16 = tpu.matmul %14, %15, %cst_15 {dimension_numbers = #tpu.dot_dimension_numbers<[1], [0], [0], [1], [0, 0, 1, 1], [], []>} : vector<1x256xf32>, vector<256x256xf32>, vector<1x256xf32> -> vector<1x256xf32>
    %17 = arith.addf %16, %3 : vector<1x256xf32>
    %cst_16 = arith.constant 0.000000e+00 : f32
    %18 = vector.broadcast %cst_16 : f32 to vector<1x256xf32>
    %19 = arith.maximumf %17, %18 : vector<1x256xf32>
    %c0_17 = arith.constant 0 : index
    %c0_18 = arith.constant 0 : index
    %20 = vector.load %arg5[%c0_17, %c0_18] : memref<256x96xf32, #tpu.memory_space<vmem>>, vector<256x96xf32>
    %cst_19 = arith.constant dense<0.000000e+00> : vector<1x96xf32>
    %21 = tpu.matmul %19, %20, %cst_19 {dimension_numbers = #tpu.dot_dimension_numbers<[1], [0], [0], [1], [0, 0, 1, 1], [], []>} : vector<1x256xf32>, vector<256x96xf32>, vector<1x96xf32> -> vector<1x96xf32>
    %22 = arith.addf %21, %4 : vector<1x96xf32>
    %c0_20 = arith.constant 0 : index
    %c0_21 = arith.constant 0 : index
    %23 = vector.load %arg7[%c0_20, %c0_21] : memref<1x96xf32, #tpu.memory_space<vmem>>, vector<1x96xf32>
    tpu.vector_store %arg7[%c0_20, %c0_21], %22 {strides = array<i32>} : memref<1x96xf32, #tpu.memory_space<vmem>>, vector<1x96xf32>,
    return
  }
  func.func @transform_0(%arg0: i32) -> (i32, i32) {
    %c0_i32 = arith.constant 0 : i32
    %c0_i32_0 = arith.constant 0 : i32
    return %arg0, %c0_i32 : i32, i32
  }
  func.func @transform_1(%arg0: i32) -> (i32, i32) {
    %c0_i32 = arith.constant 0 : i32
    %c0_i32_0 = arith.constant 0 : i32
    %c0_i32_1 = arith.constant 0 : i32
    return %c0_i32, %c0_i32_0 : i32, i32
  }
  func.func @transform_2(%arg0: i32) -> (i32, i32) {
    %c0_i32 = arith.constant 0 : i32
    %c0_i32_0 = arith.constant 0 : i32
    %c0_i32_1 = arith.constant 0 : i32
    return %c0_i32, %c0_i32_0 : i32, i32
  }
  func.func @transform_3(%arg0: i32) -> (i32, i32) {
    %c0_i32 = arith.constant 0 : i32
    %c0_i32_0 = arith.constant 0 : i32
    %c0_i32_1 = arith.constant 0 : i32
    return %c0_i32, %c0_i32_0 : i32, i32
  }
  func.func @transform_4(%arg0: i32) -> (i32, i32) {
    %c0_i32 = arith.constant 0 : i32
    %c0_i32_0 = arith.constant 0 : i32
    %c0_i32_1 = arith.constant 0 : i32
    return %c0_i32, %c0_i32_0 : i32, i32
  }
  func.func @transform_5(%arg0: i32) -> (i32, i32) {
    %c0_i32 = arith.constant 0 : i32
    %c0_i32_0 = arith.constant 0 : i32
    %c0_i32_1 = arith.constant 0 : i32
    return %c0_i32, %c0_i32_0 : i32, i32
  }
  func.func @transform_6(%arg0: i32) -> (i32, i32) {
    %c0_i32 = arith.constant 0 : i32
    %c0_i32_0 = arith.constant 0 : i32
    return %arg0, %c0_i32 : i32, i32
  }
}

</mosaic_0001>

<llo_original>
// kernel: tpu_custom_call.1
$region0: #{tpu_custom_call.1}
  #allocation0 [shape = 'u32[]', space=smem, size = 0x4, offset = 0x4, fixed_abs, tag = 'smem constant byte address 0x4 - core index']
  #allocation1 [shape = 'u32[72,128]{1,0:T(1,128)}', space=vmem, size = 0x9000, scoped, tag = 'internal scratch']
  %s0 = inlined_call_operand.vmem [shape: f32[1,128], index: 0, kind: input, shape index: {}]
  %s1 = inlined_call_operand.vmem [shape: f32[128,256], index: 1, kind: input, shape index: {}]
  %s2 = inlined_call_operand.hbm [shape: f32[256,256], index: 2, kind: input, shape index: {}]
  %s3 = inlined_call_operand.hbm [shape: f32[256,256], index: 3, kind: input, shape index: {}]
  %s4 = inlined_call_operand.vmem [shape: f32[256,96], index: 4, kind: input, shape index: {}]
  %s5 = inlined_call_operand.vmem [shape: f32[4,256], index: 5, kind: input, shape index: {}]
  %s6 = inlined_call_operand.hbm [shape: f32[1,96], index: 6, kind: output, shape index: {}]
  %s7 = sld [smem:[#allocation0]]
  $region42: #{tpu_custom_call.1} parent=0
    _
  %s9 = ssub.s32 1, %s7
  %s10 = scalar_select 0, %s9, %s7
  $region1: #{tpu_custom_call.1} parent=0
    #allocation2 [shape = 'u8[262144]{0}', space=vmem, size = 0x40000, scoped, tag = 'input window, operand 2, single buffered']
    #allocation3 [shape = 's32[1]{0}', space=sflag, size = 0x4, scoped, tag = 'scoped memory for tpu_custom_call.1']
    #allocation4 [shape = 's32[1]{0}', space=sflag, size = 0x4, scoped, tag = 'scoped memory for tpu_custom_call.1']
    #allocation5 [shape = 'u8[262144]{0}', space=vmem, size = 0x40000, scoped, tag = 'input window, operand 3, single buffered']
    #allocation6 [shape = 's32[1]{0}', space=sflag, size = 0x4, scoped, tag = 'scoped memory for tpu_custom_call.1']
    #allocation7 [shape = 'u8[512]{0}', space=vmem, size = 0x400, scoped, tag = 'output window, operand 0, single buffered']
    %11 = vsyncpa [#allocation3], 0
    %12 = vsyncpa [#allocation6], 0
    %13 = vsyncpa [#allocation4], 0
    // Predicated region
    $region2: #{tpu_custom_call.1} parent=1 // pred_check
      _
    $region3: #{tpu_custom_call.1} parent=1 // pred_check_branch
      %15 = sbr.rel (0) target = $region5
    $region4: #{tpu_custom_call.1} parent=1 // pred_region
      _
    $region5: #{tpu_custom_call.1} parent=1 // pred_fallthru
      _
    // Predicated region
    $region6: #{tpu_custom_call.1} parent=1 // pred_check
      _
    $region7: #{tpu_custom_call.1} parent=1 // pred_check_branch
      %17 = sbr.rel (0) target = $region9
    $region8: #{tpu_custom_call.1} parent=1 // pred_region
      _
    $region9: #{tpu_custom_call.1} parent=1 // pred_fallthru
      _
    // Predicated region
    $region10: #{tpu_custom_call.1} parent=1 // pred_check
      _
    $region11: #{tpu_custom_call.1} parent=1 // pred_check_branch
      %19 = sbr.rel (0) target = $region13
    $region12: #{tpu_custom_call.1} parent=1 // pred_region
      %21 = vsyncadd [#allocation3], 0
      %s22 = sshll.u32 %s2, 4
      %s23 = int_to_ptr.hbm [resolvable:$true] %s22
      %s24 = sshll.u32 [#allocation2], 4
      %s25 = int_to_ptr.vmem [resolvable:$true] %s24
      %30 = dma.hbm_to_vmem [thread:$0]  %s23, 8192, %s25, [#allocation3], 256, 256, 16
    $region13: #{tpu_custom_call.1} parent=1 // pred_fallthru
      _
    // Predicated region
    $region14: #{tpu_custom_call.1} parent=1 // pred_check
      _
    $region15: #{tpu_custom_call.1} parent=1 // pred_check_branch
      %32 = sbr.rel (0) target = $region17
    $region16: #{tpu_custom_call.1} parent=1 // pred_region
      %34 = vsyncadd [#allocation6], 0
      %s35 = sshll.u32 %s3, 4
      %s36 = int_to_ptr.hbm [resolvable:$true] %s35
      %s37 = sshll.u32 [#allocation5], 4
      %s38 = int_to_ptr.vmem [resolvable:$true] %s37
      %43 = dma.hbm_to_vmem [thread:$0]  %s36, 8192, %s38, [#allocation6], 256, 256, 16
    $region17: #{tpu_custom_call.1} parent=1 // pred_fallthru
      _
    // Predicated region
    $region18: #{tpu_custom_call.1} parent=1 // pred_check
      _
    $region19: #{tpu_custom_call.1} parent=1 // pred_check_branch
      %45 = sbr.rel (0) target = $region21
    $region20: #{tpu_custom_call.1} parent=1 // pred_region
      _
    $region21: #{tpu_custom_call.1} parent=1 // pred_fallthru
      _
    // Predicated region
    $region22: #{tpu_custom_call.1} parent=1 // pred_check
      _
    $region23: #{tpu_custom_call.1} parent=1 // pred_check_branch
      %47 = sbr.rel (0) target = $region25
    $region24: #{tpu_custom_call.1} parent=1 // pred_region
      _
    $region25: #{tpu_custom_call.1} parent=1 // pred_fallthru
      _
    // Predicated region
    $region26: #{tpu_custom_call.1} parent=1 // pred_check
      _
    $region27: #{tpu_custom_call.1} parent=1 // pred_check_branch
      %49 = sbr.rel (0) target = $region29
    $region28: #{tpu_custom_call.1} parent=1 // pred_region
      %51 = dma.done [#allocation3], 8192
    $region29: #{tpu_custom_call.1} parent=1 // pred_fallthru
      _
    // Predicated region
    $region30: #{tpu_custom_call.1} parent=1 // pred_check
      _
    $region31: #{tpu_custom_call.1} parent=1 // pred_check_branch
      %53 = sbr.rel (0) target = $region33
    $region32: #{tpu_custom_call.1} parent=1 // pred_region
      %55 = dma.done [#allocation6], 8192
    $region33: #{tpu_custom_call.1} parent=1 // pred_fallthru
      _
    %v56 = vld [vmem:[%s0] sm:$0x1]
    %v57 = vld [vmem:[%s5] ss:$4 sm:$0x3]
    %s58 = scalar_lea.vmem %s5, 1
    %v59 = vld [vmem:[%s58] ss:$4 sm:$0x3]
    %s60 = scalar_lea.vmem %s5, 2
    %v61 = vld [vmem:[%s60] ss:$4 sm:$0x3]
    %v62 = vld [vmem:[%s5 + $0x3] sm:$0x1]
    %v63 = vld [vmem:[%s1] sm:$0xff]
    %v64 = vld [vmem:[%s1 + $0x8] sm:$0xff]
    %v65 = vld [vmem:[%s1 + $0x10] sm:$0xff]
    %v66 = vld [vmem:[%s1 + $0x18] sm:$0xff]
    %v67 = vld [vmem:[%s1 + $0x20] sm:$0xff]
    %v68 = vld [vmem:[%s1 + $0x28] sm:$0xff]
    %v69 = vld [vmem:[%s1 + $0x30] sm:$0xff]
    %v70 = vld [vmem:[%s1 + $0x38] sm:$0xff]
    %v71 = vld [vmem:[%s1 + $0x40] sm:$0xff]
    %v72 = vld [vmem:[%s1 + $0x48] sm:$0xff]
    %v73 = vld [vmem:[%s1 + $0x50] sm:$0xff]
    %v74 = vld [vmem:[%s1 + $0x58] sm:$0xff]
    %v75 = vld [vmem:[%s1 + $0x60] sm:$0xff]
    %v76 = vld [vmem:[%s1 + $0x68] sm:$0xff]
    %v77 = vld [vmem:[%s1 + $0x70] sm:$0xff]
    %v78 = vld [vmem:[%s1 + $0x78] sm:$0xff]
    %v79 = vld [vmem:[%s1 + $0x80] sm:$0xff]
    %v80 = vld [vmem:[%s1 + $0x88] sm:$0xff]
    %v81 = vld [vmem:[%s1 + $0x90] sm:$0xff]
    %v82 = vld [vmem:[%s1 + $0x98] sm:$0xff]
    %v83 = vld [vmem:[%s1 + $0xa0] sm:$0xff]
    %v84 = vld [vmem:[%s1 + $0xa8] sm:$0xff]
    %v85 = vld [vmem:[%s1 + $0xb0] sm:$0xff]
    %v86 = vld [vmem:[%s1 + $0xb8] sm:$0xff]
    %v87 = vld [vmem:[%s1 + $0xc0] sm:$0xff]
    %v88 = vld [vmem:[%s1 + $0xc8] sm:$0xff]
    %v89 = vld [vmem:[%s1 + $0xd0] sm:$0xff]
    %v90 = vld [vmem:[%s1 + $0xd8] sm:$0xff]
    %v91 = vld [vmem:[%s1 + $0xe0] sm:$0xff]
    %v92 = vld [vmem:[%s1 + $0xe8] sm:$0xff]
    %v93 = vld [vmem:[%s1 + $0xf0] sm:$0xff]
    %v94 = vld [vmem:[%s1 + $0xf8] sm:$0xff]
    %v96 = vperm.slane %v57, 0
    %v97 = vperm.slane %v57, 1
    %100 = vmatpush.msra.mxu0 %v93
    %101 = vmatpush.msra.mxu0 %v91
    %102 = vmatpush.msra.mxu0 %v89
    %103 = vmatpush.msra.mxu0 %v87
    %104 = vmatpush.msra.mxu0 %v85
    %105 = vmatpush.msra.mxu0 %v83
    %106 = vmatpush.msra.mxu0 %v81
    %107 = vmatpush.msra.mxu0 %v79
    %108 = vmatpush.msra.mxu0 %v77
    %109 = vmatpush.msra.mxu0 %v75
    %110 = vmatpush.msra.mxu0 %v73
    %111 = vmatpush.msra.mxu0 %v71
    %112 = vmatpush.msra.mxu0 %v69
    %113 = vmatpush.msra.mxu0 %v67
    %114 = vmatpush.msra.mxu0 %v65
    %115 = vmatpush.msra.mxu0 %v63
    %116 = vmatmul.f32.gmra.mxu0 %v56
    %v117 = vpop.f32.mrf.mxu0
    %v118 = vadd.f32 %v96, %v117
    %119 = vdwg.mxu0
    %120 = vmatpush.msra.mxu0 %v94
    %121 = vmatpush.msra.mxu0 %v92
    %122 = vmatpush.msra.mxu0 %v90
    %123 = vmatpush.msra.mxu0 %v88
    %124 = vmatpush.msra.mxu0 %v86
    %125 = vmatpush.msra.mxu0 %v84
    %126 = vmatpush.msra.mxu0 %v82
    %127 = vmatpush.msra.mxu0 %v80
    %128 = vmatpush.msra.mxu0 %v78
    %129 = vmatpush.msra.mxu0 %v76
    %130 = vmatpush.msra.mxu0 %v74
    %131 = vmatpush.msra.mxu0 %v72
    %132 = vmatpush.msra.mxu0 %v70
    %133 = vmatpush.msra.mxu0 %v68
    %134 = vmatpush.msra.mxu0 %v66
    %135 = vmatpush.msra.mxu0 %v64
    %136 = vmatmul.f32.gmra.mxu0 %v56
    %v137 = vpop.f32.mrf.mxu0
    %v138 = vadd.f32 %v97, %v137
    %139 = vdwg.mxu0
    %v140 = vmax.f32 %v118, 0.0
    %v141 = vmax.f32 %v138, 0.0
    %v142 = vld [vmem:[#allocation2] sm:$0xff]
    %v143 = vld [vmem:[#allocation2 + $0x8] sm:$0xff]
    %v144 = vld [vmem:[#allocation2 + $0x10] sm:$0xff]
    %v145 = vld [vmem:[#allocation2 + $0x18] sm:$0xff]
    %v146 = vld [vmem:[#allocation2 + $0x20] sm:$0xff]
    %v147 = vld [vmem:[#allocation2 + $0x28] sm:$0xff]
    %v148 = vld [vmem:[#allocation2 + $0x30] sm:$0xff]
    %v149 = vld [vmem:[#allocation2 + $0x38] sm:$0xff]
    %v150 = vld [vmem:[#allocation2 + $0x40] sm:$0xff]
    %v151 = vld [vmem:[#allocation2 + $0x48] sm:$0xff]
    %v152 = vld [vmem:[#allocation2 + $0x50] sm:$0xff]
    %v153 = vld [vmem:[#allocation2 + $0x58] sm:$0xff]
    %v154 = vld [vmem:[#allocation2 + $0x60] sm:$0xff]
    %v155 = vld [vmem:[#allocation2 + $0x68] sm:$0xff]
    %v156 = vld [vmem:[#allocation2 + $0x70] sm:$0xff]
    %v157 = vld [vmem:[#allocation2 + $0x78] sm:$0xff]
    %v158 = vld [vmem:[#allocation2 + $0x80] sm:$0xff]
    %v159 = vld [vmem:[#allocation2 + $0x88] sm:$0xff]
    %v160 = vld [vmem:[#allocation2 + $0x90] sm:$0xff]
    %v161 = vld [vmem:[#allocation2 + $0x98] sm:$0xff]
    %v162 = vld [vmem:[#allocation2 + $0xa0] sm:$0xff]
    %v163 = vld [vmem:[#allocation2 + $0xa8] sm:$0xff]
    %v164 = vld [vmem:[#allocation2 + $0xb0] sm:$0xff]
    %v165 = vld [vmem:[#allocation2 + $0xb8] sm:$0xff]
    %v166 = vld [vmem:[#allocation2 + $0xc0] sm:$0xff]
    %v167 = vld [vmem:[#allocation2 + $0xc8] sm:$0xff]
    %v168 = vld [vmem:[#allocation2 + $0xd0] sm:$0xff]
    %v169 = vld [vmem:[#allocation2 + $0xd8] sm:$0xff]
    %v170 = vld [vmem:[#allocation2 + $0xe0] sm:$0xff]
    %v171 = vld [vmem:[#allocation2 + $0xe8] sm:$0xff]
    %v172 = vld [vmem:[#allocation2 + $0xf0] sm:$0xff]
    %v173 = vld [vmem:[#allocation2 + $0xf8] sm:$0xff]
    %v174 = vld [vmem:[#allocation2 + $0x100] sm:$0xff]
    %v175 = vld [vmem:[#allocation2 + $0x108] sm:$0xff]
    %v176 = vld [vmem:[#allocation2 + $0x110] sm:$0xff]
    %v177 = vld [vmem:[#allocation2 + $0x118] sm:$0xff]
    %v178 = vld [vmem:[#allocation2 + $0x120] sm:$0xff]
    %v179 = vld [vmem:[#allocation2 + $0x128] sm:$0xff]
    %v180 = vld [vmem:[#allocation2 + $0x130] sm:$0xff]
    %v181 = vld [vmem:[#allocation2 + $0x138] sm:$0xff]
    %v182 = vld [vmem:[#allocation2 + $0x140] sm:$0xff]
    %v183 = vld [vmem:[#allocation2 + $0x148] sm:$0xff]
    %v184 = vld [vmem:[#allocation2 + $0x150] sm:$0xff]
    %v185 = vld [vmem:[#allocation2 + $0x158] sm:$0xff]
    %v186 = vld [vmem:[#allocation2 + $0x160] sm:$0xff]
    %v187 = vld [vmem:[#allocation2 + $0x168] sm:$0xff]
    %v188 = vld [vmem:[#allocation2 + $0x170] sm:$0xff]
    %v189 = vld [vmem:[#allocation2 + $0x178] sm:$0xff]
    %v190 = vld [vmem:[#allocation2 + $0x180] sm:$0xff]
    %v191 = vld [vmem:[#allocation2 + $0x188] sm:$0xff]
    %v192 = vld [vmem:[#allocation2 + $0x190] sm:$0xff]
    %v193 = vld [vmem:[#allocation2 + $0x198] sm:$0xff]
    %v194 = vld [vmem:[#allocation2 + $0x1a0] sm:$0xff]
    %v195 = vld [vmem:[#allocation2 + $0x1a8] sm:$0xff]
    %v196 = vld [vmem:[#allocation2 + $0x1b0] sm:$0xff]
    %v197 = vld [vmem:[#allocation2 + $0x1b8] sm:$0xff]
    %v198 = vld [vmem:[#allocation2 + $0x1c0] sm:$0xff]
    %v199 = vld [vmem:[#allocation2 + $0x1c8] sm:$0xff]
    %v200 = vld [vmem:[#allocation2 + $0x1d0] sm:$0xff]
    %v201 = vld [vmem:[#allocation2 + $0x1d8] sm:$0xff]
    %v202 = vld [vmem:[#allocation2 + $0x1e0] sm:$0xff]
    %v203 = vld [vmem:[#allocation2 + $0x1e8] sm:$0xff]
    %v204 = vld [vmem:[#allocation2 + $0x1f0] sm:$0xff]
    %v205 = vld [vmem:[#allocation2 + $0x1f8] sm:$0xff]
    %v207 = vperm.slane %v59, 0
    %v208 = vperm.slane %v59, 1
    %211 = vmatpush.msra.mxu0 %v172
    %212 = vmatpush.msra.mxu0 %v170
    %213 = vmatpush.msra.mxu0 %v168
    %214 = vmatpush.msra.mxu0 %v166
    %215 = vmatpush.msra.mxu0 %v164
    %216 = vmatpush.msra.mxu0 %v162
    %217 = vmatpush.msra.mxu0 %v160
    %218 = vmatpush.msra.mxu0 %v158
    %219 = vmatpush.msra.mxu0 %v156
    %220 = vmatpush.msra.mxu0 %v154
    %221 = vmatpush.msra.mxu0 %v152
    %222 = vmatpush.msra.mxu0 %v150
    %223 = vmatpush.msra.mxu0 %v148
    %224 = vmatpush.msra.mxu0 %v146
    %225 = vmatpush.msra.mxu0 %v144
    %226 = vmatpush.msra.mxu0 %v142
    %227 = vmatmul.f32.gmra.mxu0 %v140
    %v228 = vpop.f32.mrf.mxu0
    %v229 = vadd.f32 %v207, %v228
    %230 = vdwg.mxu0
    %231 = vmatpush.msra.mxu0 %v204
    %232 = vmatpush.msra.mxu0 %v202
    %233 = vmatpush.msra.mxu0 %v200
    %234 = vmatpush.msra.mxu0 %v198
    %235 = vmatpush.msra.mxu0 %v196
    %236 = vmatpush.msra.mxu0 %v194
    %237 = vmatpush.msra.mxu0 %v192
    %238 = vmatpush.msra.mxu0 %v190
    %239 = vmatpush.msra.mxu0 %v188
    %240 = vmatpush.msra.mxu0 %v186
    %241 = vmatpush.msra.mxu0 %v184
    %242 = vmatpush.msra.mxu0 %v182
    %243 = vmatpush.msra.mxu0 %v180
    %244 = vmatpush.msra.mxu0 %v178
    %245 = vmatpush.msra.mxu0 %v176
    %246 = vmatpush.msra.mxu0 %v174
    %247 = vmatmul.f32.gmra.mxu0 %v141
    %v248 = vpop.f32.mrf.mxu0
    %v249 = vadd.f32 %v229, %v248
    %250 = vdwg.mxu0
    %251 = vmatpush.msra.mxu0 %v173
    %252 = vmatpush.msra.mxu0 %v171
    %253 = vmatpush.msra.mxu0 %v169
    %254 = vmatpush.msra.mxu0 %v167
    %255 = vmatpush.msra.mxu0 %v165
    %256 = vmatpush.msra.mxu0 %v163
    %257 = vmatpush.msra.mxu0 %v161
    %258 = vmatpush.msra.mxu0 %v159
    %259 = vmatpush.msra.mxu0 %v157
    %260 = vmatpush.msra.mxu0 %v155
    %261 = vmatpush.msra.mxu0 %v153
    %262 = vmatpush.msra.mxu0 %v151
    %263 = vmatpush.msra.mxu0 %v149
    %264 = vmatpush.msra.mxu0 %v147
    %265 = vmatpush.msra.mxu0 %v145
    %266 = vmatpush.msra.mxu0 %v143
    %267 = vmatmul.f32.gmra.mxu0 %v140
    %v268 = vpop.f32.mrf.mxu0
    %v269 = vadd.f32 %v208, %v268
    %270 = vdwg.mxu0
    %271 = vmatpush.msra.mxu0 %v205
    %272 = vmatpush.msra.mxu0 %v203
    %273 = vmatpush.msra.mxu0 %v201
    %274 = vmatpush.msra.mxu0 %v199
    %275 = vmatpush.msra.mxu0 %v197
    %276 = vmatpush.msra.mxu0 %v195
    %277 = vmatpush.msra.mxu0 %v193
    %278 = vmatpush.msra.mxu0 %v191
    %279 = vmatpush.msra.mxu0 %v189
    %280 = vmatpush.msra.mxu0 %v187
    %281 = vmatpush.msra.mxu0 %v185
    %282 = vmatpush.msra.mxu0 %v183
    %283 = vmatpush.msra.mxu0 %v181
    %284 = vmatpush.msra.mxu0 %v179
    %285 = vmatpush.msra.mxu0 %v177
    %286 = vmatpush.msra.mxu0 %v175
    %287 = vmatmul.f32.gmra.mxu0 %v141
    %v288 = vpop.f32.mrf.mxu0
    %v289 = vadd.f32 %v269, %v288
    %290 = vdwg.mxu0
    %v291 = vmax.f32 %v249, 0.0
    %v292 = vmax.f32 %v289, 0.0
    %v293 = vld [vmem:[#allocation5] sm:$0xff]
    %v294 = vld [vmem:[#allocation5 + $0x8] sm:$0xff]
    %v295 = vld [vmem:[#allocation5 + $0x10] sm:$0xff]
    %v296 = vld [vmem:[#allocation5 + $0x18] sm:$0xff]
    %v297 = vld [vmem:[#allocation5 + $0x20] sm:$0xff]
    %v298 = vld [vmem:[#allocation5 + $0x28] sm:$0xff]
    %v299 = vld [vmem:[#allocation5 + $0x30] sm:$0xff]
    %v300 = vld [vmem:[#allocation5 + $0x38] sm:$0xff]
    %v301 = vld [vmem:[#allocation5 + $0x40] sm:$0xff]
    %v302 = vld [vmem:[#allocation5 + $0x48] sm:$0xff]
    %v303 = vld [vmem:[#allocation5 + $0x50] sm:$0xff]
    %v304 = vld [vmem:[#allocation5 + $0x58] sm:$0xff]
    %v305 = vld [vmem:[#allocation5 + $0x60] sm:$0xff]
    %v306 = vld [vmem:[#allocation5 + $0x68] sm:$0xff]
    %v307 = vld [vmem:[#allocation5 + $0x70] sm:$0xff]
    %v308 = vld [vmem:[#allocation5 + $0x78] sm:$0xff]
    %v309 = vld [vmem:[#allocation5 + $0x80] sm:$0xff]
    %v310 = vld [vmem:[#allocation5 + $0x88] sm:$0xff]
    %v311 = vld [vmem:[#allocation5 + $0x90] sm:$0xff]
    %v312 = vld [vmem:[#allocation5 + $0x98] sm:$0xff]
    %v313 = vld [vmem:[#allocation5 + $0xa0] sm:$0xff]
    %v314 = vld [vmem:[#allocation5 + $0xa8] sm:$0xff]
    %v315 = vld [vmem:[#allocation5 + $0xb0] sm:$0xff]
    %v316 = vld [vmem:[#allocation5 + $0xb8] sm:$0xff]
    %v317 = vld [vmem:[#allocation5 + $0xc0] sm:$0xff]
    %v318 = vld [vmem:[#allocation5 + $0xc8] sm:$0xff]
    %v319 = vld [vmem:[#allocation5 + $0xd0] sm:$0xff]
    %v320 = vld [vmem:[#allocation5 + $0xd8] sm:$0xff]
    %v321 = vld [vmem:[#allocation5 + $0xe0] sm:$0xff]
    %v322 = vld [vmem:[#allocation5 + $0xe8] sm:$0xff]
    %v323 = vld [vmem:[#allocation5 + $0xf0] sm:$0xff]
    %v324 = vld [vmem:[#allocation5 + $0xf8] sm:$0xff]
    %v325 = vld [vmem:[#allocation5 + $0x100] sm:$0xff]
    %v326 = vld [vmem:[#allocation5 + $0x108] sm:$0xff]
    %v327 = vld [vmem:[#allocation5 + $0x110] sm:$0xff]
    %v328 = vld [vmem:[#allocation5 + $0x118] sm:$0xff]
    %v329 = vld [vmem:[#allocation5 + $0x120] sm:$0xff]
    %v330 = vld [vmem:[#allocation5 + $0x128] sm:$0xff]
    %v331 = vld [vmem:[#allocation5 + $0x130] sm:$0xff]
    %v332 = vld [vmem:[#allocation5 + $0x138] sm:$0xff]
    %v333 = vld [vmem:[#allocation5 + $0x140] sm:$0xff]
    %v334 = vld [vmem:[#allocation5 + $0x148] sm:$0xff]
    %v335 = vld [vmem:[#allocation5 + $0x150] sm:$0xff]
    %v336 = vld [vmem:[#allocation5 + $0x158] sm:$0xff]
    %v337 = vld [vmem:[#allocation5 + $0x160] sm:$0xff]
    %v338 = vld [vmem:[#allocation5 + $0x168] sm:$0xff]
    %v339 = vld [vmem:[#allocation5 + $0x170] sm:$0xff]
    %v340 = vld [vmem:[#allocation5 + $0x178] sm:$0xff]
    %v341 = vld [vmem:[#allocation5 + $0x180] sm:$0xff]
    %v342 = vld [vmem:[#allocation5 + $0x188] sm:$0xff]
    %v343 = vld [vmem:[#allocation5 + $0x190] sm:$0xff]
    %v344 = vld [vmem:[#allocation5 + $0x198] sm:$0xff]
    %v345 = vld [vmem:[#allocation5 + $0x1a0] sm:$0xff]
    %v346 = vld [vmem:[#allocation5 + $0x1a8] sm:$0xff]
    %v347 = vld [vmem:[#allocation5 + $0x1b0] sm:$0xff]
    %v348 = vld [vmem:[#allocation5 + $0x1b8] sm:$0xff]
    %v349 = vld [vmem:[#allocation5 + $0x1c0] sm:$0xff]
    %v350 = vld [vmem:[#allocation5 + $0x1c8] sm:$0xff]
    %v351 = vld [vmem:[#allocation5 + $0x1d0] sm:$0xff]
    %v352 = vld [vmem:[#allocation5 + $0x1d8] sm:$0xff]
    %v353 = vld [vmem:[#allocation5 + $0x1e0] sm:$0xff]
    %v354 = vld [vmem:[#allocation5 + $0x1e8] sm:$0xff]
    %v355 = vld [vmem:[#allocation5 + $0x1f0] sm:$0xff]
    %v356 = vld [vmem:[#allocation5 + $0x1f8] sm:$0xff]
    %v358 = vperm.slane %v61, 0
    %v359 = vperm.slane %v61, 1
    %362 = vmatpush.msra.mxu0 %v323
    %363 = vmatpush.msra.mxu0 %v321
    %364 = vmatpush.msra.mxu0 %v319
    %365 = vmatpush.msra.mxu0 %v317
    %366 = vmatpush.msra.mxu0 %v315
    %367 = vmatpush.msra.mxu0 %v313
    %368 = vmatpush.msra.mxu0 %v311
    %369 = vmatpush.msra.mxu0 %v309
    %370 = vmatpush.msra.mxu0 %v307
    %371 = vmatpush.msra.mxu0 %v305
    %372 = vmatpush.msra.mxu0 %v303
    %373 = vmatpush.msra.mxu0 %v301
    %374 = vmatpush.msra.mxu0 %v299
    %375 = vmatpush.msra.mxu0 %v297
    %376 = vmatpush.msra.mxu0 %v295
    %377 = vmatpush.msra.mxu0 %v293
    %378 = vmatmul.f32.gmra.mxu0 %v291
    %v379 = vpop.f32.mrf.mxu0
    %v380 = vadd.f32 %v358, %v379
    %381 = vdwg.mxu0
    %382 = vmatpush.msra.mxu0 %v355
    %383 = vmatpush.msra.mxu0 %v353
    %384 = vmatpush.msra.mxu0 %v351
    %385 = vmatpush.msra.mxu0 %v349
    %386 = vmatpush.msra.mxu0 %v347
    %387 = vmatpush.msra.mxu0 %v345
    %388 = vmatpush.msra.mxu0 %v343
    %389 = vmatpush.msra.mxu0 %v341
    %390 = vmatpush.msra.mxu0 %v339
    %391 = vmatpush.msra.mxu0 %v337
    %392 = vmatpush.msra.mxu0 %v335
    %393 = vmatpush.msra.mxu0 %v333
    %394 = vmatpush.msra.mxu0 %v331
    %395 = vmatpush.msra.mxu0 %v329
    %396 = vmatpush.msra.mxu0 %v327
    %397 = vmatpush.msra.mxu0 %v325
    %398 = vmatmul.f32.gmra.mxu0 %v292
    %v399 = vpop.f32.mrf.mxu0
    %v400 = vadd.f32 %v380, %v399
    %401 = vdwg.mxu0
    %402 = vmatpush.msra.mxu0 %v324
    %403 = vmatpush.msra.mxu0 %v322
    %404 = vmatpush.msra.mxu0 %v320
    %405 = vmatpush.msra.mxu0 %v318
    %406 = vmatpush.msra.mxu0 %v316
    %407 = vmatpush.msra.mxu0 %v314
    %408 = vmatpush.msra.mxu0 %v312
    %409 = vmatpush.msra.mxu0 %v310
    %410 = vmatpush.msra.mxu0 %v308
    %411 = vmatpush.msra.mxu0 %v306
    %412 = vmatpush.msra.mxu0 %v304
    %413 = vmatpush.msra.mxu0 %v302
    %414 = vmatpush.msra.mxu0 %v300
    %415 = vmatpush.msra.mxu0 %v298
    %416 = vmatpush.msra.mxu0 %v296
    %417 = vmatpush.msra.mxu0 %v294
    %418 = vmatmul.f32.gmra.mxu0 %v291
    %v419 = vpop.f32.mrf.mxu0
    %v420 = vadd.f32 %v359, %v419
    %421 = vdwg.mxu0
    %422 = vmatpush.msra.mxu0 %v356
    %423 = vmatpush.msra.mxu0 %v354
    %424 = vmatpush.msra.mxu0 %v352
    %425 = vmatpush.msra.mxu0 %v350
    %426 = vmatpush.msra.mxu0 %v348
    %427 = vmatpush.msra.mxu0 %v346
    %428 = vmatpush.msra.mxu0 %v344
    %429 = vmatpush.msra.mxu0 %v342
    %430 = vmatpush.msra.mxu0 %v340
    %431 = vmatpush.msra.mxu0 %v338
    %432 = vmatpush.msra.mxu0 %v336
    %433 = vmatpush.msra.mxu0 %v334
    %434 = vmatpush.msra.mxu0 %v332
    %435 = vmatpush.msra.mxu0 %v330
    %436 = vmatpush.msra.mxu0 %v328
    %437 = vmatpush.msra.mxu0 %v326
    %438 = vmatmul.f32.gmra.mxu0 %v292
    %v439 = vpop.f32.mrf.mxu0
    %v440 = vadd.f32 %v420, %v439
    %441 = vdwg.mxu0
    %v442 = vmax.f32 %v400, 0.0
    %v443 = vmax.f32 %v440, 0.0
    %v444 = vld [vmem:[%s4] sm:$0xff]
    %v445 = vld [vmem:[%s4 + $0x8] sm:$0xff]
    %v446 = vld [vmem:[%s4 + $0x10] sm:$0xff]
    %v447 = vld [vmem:[%s4 + $0x18] sm:$0xff]
    %v448 = vld [vmem:[%s4 + $0x20] sm:$0xff]
    %v449 = vld [vmem:[%s4 + $0x28] sm:$0xff]
    %v450 = vld [vmem:[%s4 + $0x30] sm:$0xff]
    %v451 = vld [vmem:[%s4 + $0x38] sm:$0xff]
    %v452 = vld [vmem:[%s4 + $0x40] sm:$0xff]
    %v453 = vld [vmem:[%s4 + $0x48] sm:$0xff]
    %v454 = vld [vmem:[%s4 + $0x50] sm:$0xff]
    %v455 = vld [vmem:[%s4 + $0x58] sm:$0xff]
    %v456 = vld [vmem:[%s4 + $0x60] sm:$0xff]
    %v457 = vld [vmem:[%s4 + $0x68] sm:$0xff]
    %v458 = vld [vmem:[%s4 + $0x70] sm:$0xff]
    %v459 = vld [vmem:[%s4 + $0x78] sm:$0xff]
    %v460 = vld [vmem:[%s4 + $0x80] sm:$0xff]
    %v461 = vld [vmem:[%s4 + $0x88] sm:$0xff]
    %v462 = vld [vmem:[%s4 + $0x90] sm:$0xff]
    %v463 = vld [vmem:[%s4 + $0x98] sm:$0xff]
    %v464 = vld [vmem:[%s4 + $0xa0] sm:$0xff]
    %v465 = vld [vmem:[%s4 + $0xa8] sm:$0xff]
    %v466 = vld [vmem:[%s4 + $0xb0] sm:$0xff]
    %v467 = vld [vmem:[%s4 + $0xb8] sm:$0xff]
    %v468 = vld [vmem:[%s4 + $0xc0] sm:$0xff]
    %v469 = vld [vmem:[%s4 + $0xc8] sm:$0xff]
    %v470 = vld [vmem:[%s4 + $0xd0] sm:$0xff]
    %v471 = vld [vmem:[%s4 + $0xd8] sm:$0xff]
    %v472 = vld [vmem:[%s4 + $0xe0] sm:$0xff]
    %v473 = vld [vmem:[%s4 + $0xe8] sm:$0xff]
    %v474 = vld [vmem:[%s4 + $0xf0] sm:$0xff]
    %v475 = vld [vmem:[%s4 + $0xf8] sm:$0xff]
    %476 = vmatpush.msra.mxu0 %v459
    %477 = vmatpush.msra.mxu0 %v458
    %478 = vmatpush.msra.mxu0 %v457
    %479 = vmatpush.msra.mxu0 %v456
    %480 = vmatpush.msra.mxu0 %v455
    %481 = vmatpush.msra.mxu0 %v454
    %482 = vmatpush.msra.mxu0 %v453
    %483 = vmatpush.msra.mxu0 %v452
    %484 = vmatpush.msra.mxu0 %v451
    %485 = vmatpush.msra.mxu0 %v450
    %486 = vmatpush.msra.mxu0 %v449
    %487 = vmatpush.msra.mxu0 %v448
    %488 = vmatpush.msra.mxu0 %v447
    %489 = vmatpush.msra.mxu0 %v446
    %490 = vmatpush.msra.mxu0 %v445
    %491 = vmatpush.msra.mxu0 %v444
    %492 = vmatmul.f32.gmra.mxu0 %v442
    %v493 = vpop.f32.mrf.mxu0
    %v494 = vadd.f32 %v62, %v493
    %495 = vdwg.mxu0
    %496 = vmatpush.msra.mxu0 %v475
    %497 = vmatpush.msra.mxu0 %v474
    %498 = vmatpush.msra.mxu0 %v473
    %499 = vmatpush.msra.mxu0 %v472
    %500 = vmatpush.msra.mxu0 %v471
    %501 = vmatpush.msra.mxu0 %v470
    %502 = vmatpush.msra.mxu0 %v469
    %503 = vmatpush.msra.mxu0 %v468
    %504 = vmatpush.msra.mxu0 %v467
    %505 = vmatpush.msra.mxu0 %v466
    %506 = vmatpush.msra.mxu0 %v465
    %507 = vmatpush.msra.mxu0 %v464
    %508 = vmatpush.msra.mxu0 %v463
    %509 = vmatpush.msra.mxu0 %v462
    %510 = vmatpush.msra.mxu0 %v461
    %511 = vmatpush.msra.mxu0 %v460
    %512 = vmatmul.f32.gmra.mxu0 %v443
    %v513 = vpop.f32.mrf.mxu0
    %v514 = vadd.f32 %v494, %v513
    %515 = vdwg.mxu0
    %vm516 = vcmask 778240
    %517 = vst.msk [vmem:[#allocation7] sm:$0x1] %vm516, %v514
    // Predicated region
    $region34: #{tpu_custom_call.1} parent=1 // pred_check
      _
    $region35: #{tpu_custom_call.1} parent=1 // pred_check_branch
      %519 = sbr.rel (0) target = $region37
    $region36: #{tpu_custom_call.1} parent=1 // pred_region
      %521 = vsyncadd [#allocation4], 0
      %s523 = sshll.u32 [#allocation7], 4
      %s524 = int_to_ptr.vmem [resolvable:$true] %s523
      %s525 = sshll.u32 %s6, 4
      %s526 = int_to_ptr.hbm [resolvable:$true] %s525
      %528 = dma.vmem_to_hbm [thread:$0]  %s524, 16, %s526, [#allocation4]
    $region37: #{tpu_custom_call.1} parent=1 // pred_fallthru
      _
    // Predicated region
    $region38: #{tpu_custom_call.1} parent=1 // pred_check
      _
    $region39: #{tpu_custom_call.1} parent=1 // pred_check_branch
      %530 = sbr.rel (0) target = $region41
    $region40: #{tpu_custom_call.1} parent=1 // pred_region
      %532 = dma.done [#allocation4], 16
    $region41: #{tpu_custom_call.1} parent=1 // pred_fallthru
      _
    %533 = vsyncpa [#allocation3], 1
    %534 = vsyncpa [#allocation6], 1
    %535 = vsyncpa [#allocation4], 1

</llo_original>
